<compile_context>
chip_gen: v7x
topology: tpu7x:2x2x1
jax: 0.10.0
libtpu: 0.0.40
codegen_flags: <defaults>
</compile_context>

<pallas_src>
import functools

import jax
import jax.numpy as jnp
from jax.experimental import pallas as pl
from jax.experimental.pallas import tpu as pltpu


_LANE = 128                            # vreg lane width; last dim stays lane-dense
_TARGET_TILE_BYTES = 2 * 1024 * 1024   # ~2 MiB per buffer; 4 bufs (in+out, dbl-buffered)
                                       # = 8 MiB VMEM, safe on v5e/v6e/v7x defaults


def _sublane(dtype) -> int:
    """Native sublane packing multiple for dtype (8 for 4B, 16 for 2B, 32 for 1B)."""
    return max(8, 32 // jnp.dtype(dtype).itemsize)


def _round_up(n, m):
    return ((n + m - 1) // m) * m


def _apply_act(x, act):
    """The activation itself on jnp values (used in-kernel and for tiny tails)."""
    if act == "relu":
        return jnp.maximum(x, 0.0)                    # VPU, native dtype (no f32 trip)
    # Transcendentals: upcast only when not already f32 (kernel stays HBM-bound).
    xf = x if x.dtype == jnp.float32 else x.astype(jnp.float32)
    if act == "sigmoid":
        y = 1.0 / (1.0 + jnp.exp(-xf))                # exp on EUP; overflow-safe form
    elif act == "tanh":
        y = jnp.tanh(xf)                              # EUP
    else:
        raise ValueError(f"unsupported activation: {act}")
    return y.astype(x.dtype)


def _activation_kernel(x_ref, o_ref, *, act):
    o_ref[...] = _apply_act(x_ref[...], act).astype(o_ref.dtype)


@functools.partial(jax.jit, static_argnames=("act",))
def activation_forward(x, act="relu"):
    """Forward pass of `Activation`: elementwise act(x), any input shape."""
    orig_shape = x.shape
    total = x.size
    if total == 0:
        return x

    dtype = x.dtype
    itemsize = jnp.dtype(dtype).itemsize
    sublane = _sublane(dtype)
    flat = x.reshape(-1)                     # zero-copy metadata reshape (row-major)

    bulk = (total // _LANE) * _LANE          # 128-aligned bulk -> Pallas kernel
    tail = total - bulk                      # <128-element tail -> trivial XLA op

    outs = []
    if bulk:
        rows = bulk // _LANE
        # Zero-copy view when the size is lane-aligned; otherwise slice the bulk.
        x2d = (flat if tail == 0 else flat[:bulk]).reshape(rows, _LANE)

        if rows <= sublane:
            # Tiny tensor: a single block equal to the full array dims is allowed.
            tile_rows = rows
        else:
            target_rows = max(
                sublane,
                (_TARGET_TILE_BYTES // (_LANE * itemsize)) // sublane * sublane,
            )
            tile_rows = min(target_rows, _round_up(rows, sublane))
            if tile_rows >= rows:
                # Fits in one tile: split in two so the "parallel" grid axis can
                # shard across v7x's 2 TensorCores (cheap on single-TC v5e/v6e).
                tile_rows = _round_up(pl.cdiv(rows, 2), sublane)

        grid = (pl.cdiv(rows, tile_rows),)   # ragged last tile handled by Pallas

        out2d = pl.pallas_call(
            functools.partial(_activation_kernel, act=act),
            out_shape=jax.ShapeDtypeStruct((rows, _LANE), dtype),
            grid=grid,
            in_specs=[pl.BlockSpec((tile_rows, _LANE), lambda i: (i, 0))],
            out_specs=pl.BlockSpec((tile_rows, _LANE), lambda i: (i, 0)),
            compiler_params=pltpu.CompilerParams(
                dimension_semantics=("parallel",)),
        )(x2d)
        outs.append(out2d.reshape(-1))

    if tail:
        # TODO(synk): fold the <128-element tail into the kernel via a masked
        # store of the final block (SMEM-prefetched `total`) to also drop the
        # bulk slice + concatenate passes for non-lane-aligned sizes.
        outs.append(_apply_act(flat[bulk:], act).astype(dtype))

    out_flat = outs[0] if len(outs) == 1 else jnp.concatenate(outs)
    return out_flat.reshape(orig_shape)


# TODO(synk): `Activation.backward` (grad * derivative(input)) is not part of
# the forward pass and is not implemented here.


def _reference_forward(x, act):
    if act == "relu":
        return jnp.maximum(x, 0.0)
    if act == "sigmoid":
        return jax.nn.sigmoid(x)
    if act == "tanh":
        return jnp.tanh(x)
    raise ValueError(act)


if __name__ == "__main__":
    key = jax.random.PRNGKey(0)

    # Primary (module-consistent) shape: batch=2, channels=4, spatial=16x16.
    x = jax.random.normal(key, (2, 4, 16, 16), dtype=jnp.float32)
    # Extra non-128-divisible shape to exercise the tail path.
    x_odd = jax.random.normal(jax.random.PRNGKey(1), (2, 5, 13, 3), dtype=jnp.float32)

    for act in ("relu", "sigmoid", "tanh"):
        for inp in (x, x_odd):
            out = jax.block_until_ready(activation_forward(inp, act=act))
            ref = _reference_forward(inp, act)
            assert out.shape == inp.shape, (act, out.shape)
            assert out.dtype == inp.dtype, (act, out.dtype)
            assert jnp.allclose(out, ref, atol=1e-6, rtol=1e-6), act

    print("KERNEL_OK")
</pallas_src>

<mosaic_0001>
module attributes {stable_mosaic.version = 11 : i64} {
  func.func @_activation_kernel(%arg0: i32, %arg1: memref<8x128xf32, #tpu.memory_space<vmem>>, %arg2: memref<8x128xf32, #tpu.memory_space<vmem>>) attributes {dimension_semantics = [#tpu.dimension_semantics<parallel>], iteration_bounds = array<i64: 2>, scalar_prefetch = 0 : i64, scratch_operands = 0 : i64, tpu.core_type = #tpu.core_type<tc>, window_params = [{transform_indices = @transform_0, window_bounds = array<i64: 8, 128>}, {transform_indices = @transform_1, window_bounds = array<i64: 8, 128>}]} {
    %c0 = arith.constant 0 : index
    %c0_0 = arith.constant 0 : index
    %0 = vector.load %arg1[%c0, %c0_0] : memref<8x128xf32, #tpu.memory_space<vmem>>, vector<8x128xf32>
    %cst = arith.constant 0.000000e+00 : f32
    %1 = vector.broadcast %cst : f32 to vector<8x128xf32>
    %2 = arith.maximumf %0, %1 : vector<8x128xf32>
    %c0_1 = arith.constant 0 : index
    %c0_2 = arith.constant 0 : index
    %3 = vector.load %arg2[%c0_1, %c0_2] : memref<8x128xf32, #tpu.memory_space<vmem>>, vector<8x128xf32>
    tpu.vector_store %arg2[%c0_1, %c0_2], %2 {strides = array<i32>} : memref<8x128xf32, #tpu.memory_space<vmem>>, vector<8x128xf32>,
    return
  }
  func.func @transform_0(%arg0: i32) -> (i32, i32) {
    %c0_i32 = arith.constant 0 : i32
    %c0_i32_0 = arith.constant 0 : i32
    return %arg0, %c0_i32 : i32, i32
  }
  func.func @transform_1(%arg0: i32) -> (i32, i32) {
    %c0_i32 = arith.constant 0 : i32
    %c0_i32_0 = arith.constant 0 : i32
    return %arg0, %c0_i32 : i32, i32
  }
}

</mosaic_0001>

<llo_original>
// kernel: activation_forward.1
$region0: #{activation_forward.1}
  #allocation0 [shape = 'u32[]', space=smem, size = 0x4, offset = 0x4, fixed_abs, tag = 'smem constant byte address 0x4 - core index']
  #allocation1 [shape = 'u32[144,128]{1,0:T(1,128)}', space=vmem, size = 0x12000, scoped, tag = 'internal scratch']
  %s0 = inlined_call_operand.vmem [shape: f32[16,128], index: 0, kind: input, shape index: {}]
  %s1 = inlined_call_operand.vmem [shape: f32[16,128], index: 1, kind: output, shape index: {}]
  %s2 = sld [smem:[#allocation0]]
  $region37: #{activation_forward.1} parent=0
    _
  %s4 = ssub.s32 1, %s2
  %s5 = scalar_select 0, %s4, %s2
  loop: start=0, step=1, limit=4
  $region2: #{activation_forward.1} parent=0 // loop_pre_header
    _
  $region3: #{activation_forward.1} parent=0 // loop_header
    %s7 = sphi 0, %s11
    %p8 = scmp.ge.s32.totalorder %s7, 4
    %s17 = sphi 0, %s19
    %s20 = sphi 0, %s17
    %s21 = sphi 0, %s20
    %s37 = sphi 0, %s21
    %s43 = sphi 0, %s45
    %s46 = sphi 0, %s43
    %s47 = sphi 0, %s46
    %s63 = sphi 0, %s47
  $region4: #{activation_forward.1} parent=0 // loop_header_branch
    %10 = sbr.rel (%p8) target = $region8
  $region5: #{activation_forward.1} parent=0 // loop_body
    %s12 = ssub.s32 %s7, 1
    %s13 = ssub.s32 %s7, 2
    %s14 = sadd.s32 %s7, 1
    %s15 = ssub.s32 %s7, %s14
    %p16 = scmp.eq.s32.totalorder %s15, 0
    %s18 = sadd.s32 %s17, 1
    %s19 = scalar_select %p16, %s17, %s18
    %p22 = pneg %p16
    %p23 = scmp.eq.s32.totalorder %s7, 1
    %p24 = por %p22, %p23
    %p25 = scmp.ne.s32.totalorder %s17, %s20
    %p26 = scmp.eq.s32.totalorder %s7, 0
    %p27 = por %p25, %p26
    %p28 = scmp.ne.s32.totalorder %s17, %s20
    %p29 = scmp.eq.s32.totalorder %s12, 1
    %p30 = por %p28, %p29
    %p31 = scmp.ne.s32.totalorder %s20, %s21
    %p32 = scmp.eq.s32.totalorder %s12, 0
    %p33 = por %p31, %p32
    %p34 = scmp.ne.s32.totalorder %s20, %s21
    %p35 = scmp.eq.s32.totalorder %s13, 1
    %p36 = por %p34, %p35
    %p38 = scmp.ne.s32.totalorder %s21, %s37
    %p39 = scmp.eq.s32.totalorder %s13, 0
    %p40 = por %p38, %p39
    %s41 = ssub.s32 %s7, %s14
    %p42 = scmp.eq.s32.totalorder %s41, 0
    %s44 = sadd.s32 %s43, 1
    %s45 = scalar_select %p42, %s43, %s44
    %p48 = pneg %p42
    %p49 = scmp.eq.s32.totalorder %s7, 1
    %p50 = por %p48, %p49
    %p51 = scmp.ne.s32.totalorder %s43, %s46
    %p52 = scmp.eq.s32.totalorder %s7, 0
    %p53 = por %p51, %p52
    %p54 = scmp.ne.s32.totalorder %s43, %s46
    %p55 = scmp.eq.s32.totalorder %s12, 1
    %p56 = por %p54, %p55
    %p57 = scmp.ne.s32.totalorder %s46, %s47
    %p58 = scmp.eq.s32.totalorder %s12, 0
    %p59 = por %p57, %p58
    %p60 = scmp.ne.s32.totalorder %s46, %s47
    %p61 = scmp.eq.s32.totalorder %s13, 1
    %p62 = por %p60, %p61
    %p64 = scmp.ne.s32.totalorder %s47, %s63
    %p65 = scmp.eq.s32.totalorder %s13, 0
    %p66 = por %p64, %p65
    %p67 = scmp.le.s32.totalorder 1, %s7
    %p68 = scmp.lt.s32.totalorder %s7, 3
    %p69 = pnand %p67, %p68
    %p70 = pneg %p69
    // Predicated region
    $region9: #{activation_forward.1} parent=5 // pred_check
      _
    $region10: #{activation_forward.1} parent=5 // pred_check_branch
      %72 = sbr.rel (%p69) target = $region12
    $region11: #{activation_forward.1} parent=5 // pred_region
      %s73 = ssub.s32 %s7, 1
    $region12: #{activation_forward.1} parent=5 // pred_fallthru
      _
    %p74 = scmp.lt.s32.totalorder %s7, 2
    // Predicated region
    $region13: #{activation_forward.1} parent=5 // pred_check
      %p75 = pneg %p74
    $region14: #{activation_forward.1} parent=5 // pred_check_branch
      %77 = sbr.rel (%p75) target = $region16
    $region15: #{activation_forward.1} parent=5 // pred_region
      // Predicated region
      $region17: #{activation_forward.1} parent=15 // pred_check
        %p78 = pneg %p27
      $region18: #{activation_forward.1} parent=15 // pred_check_branch
        %80 = sbr.rel (%p78) target = $region20
      $region19: #{activation_forward.1} parent=15 // pred_region
        %p81 = scmp.lt.s32.totalorder %s7, 1
        %s82 = scalar_select %p81, %s7, 1
        %s83 = smul.addr %s82, 8
        %s84 = scalar_lea.vmem %s0, %s83
      $region20: #{activation_forward.1} parent=15 // pred_fallthru
        _
    $region16: #{activation_forward.1} parent=5 // pred_fallthru
      _
    %p85 = scmp.le.s32.totalorder 1, %s7
    %p86 = scmp.lt.s32.totalorder %s7, 3
    %p87 = pnand %p85, %p86
    %p88 = pneg %p87
    // Predicated region
    $region21: #{activation_forward.1} parent=5 // pred_check
      _
    $region22: #{activation_forward.1} parent=5 // pred_check_branch
      %90 = sbr.rel (%p87) target = $region24
    $region23: #{activation_forward.1} parent=5 // pred_region
      %s91 = ssub.s32 %s7, 1
      %p92 = scmp.lt.s32.totalorder %s12, 1
      %s93 = scalar_select %p92, %s12, 1
      %s94 = smul.addr %s93, 8
      %s95 = scalar_lea.vmem %s0, %s94
      %p96 = pneg %p33
      %p97 = pneg %p30
      %p98 = pneg %p59
      %p99 = pneg %p56
      %p100 = scmp.lt.s32.totalorder %s12, 1
      %s101 = scalar_select %p100, %s12, 1
      %s102 = smul.addr %s101, 8
      %s103 = scalar_lea.vmem %s1, %s102
      %p104 = scmp.lt.s32.totalorder %s12, 1
      %s105 = scalar_select %p104, %s12, 1
      %s106 = smul.addr %s105, 8
      %s107 = scalar_lea.vmem %s0, %s106
      %p108 = scmp.lt.s32.totalorder %s12, 1
      %s109 = scalar_select %p108, %s12, 1
      %s110 = smul.addr %s109, 8
      %s111 = scalar_lea.vmem %s1, %s110
      %v112 = vld [vmem:[%s107] sm:$0xff]
      %v113 = vmax.f32 %v112, 0.0
      %114 = vst [vmem:[%s111] sm:$0xff] %v113
      %p115 = scmp.lt.s32.totalorder %s12, 1
      %s116 = scalar_select %p115, %s12, 1
      %s117 = smul.addr %s116, 8
      %s118 = scalar_lea.vmem %s1, %s117
      // Predicated region
      $region25: #{activation_forward.1} parent=23 // pred_check
        %p119 = pneg %p56
      $region26: #{activation_forward.1} parent=23 // pred_check_branch
        %121 = sbr.rel (%p119) target = $region28
      $region27: #{activation_forward.1} parent=23 // pred_region
        _
      $region28: #{activation_forward.1} parent=23 // pred_fallthru
        _
    $region24: #{activation_forward.1} parent=5 // pred_fallthru
      _
    %p122 = scmp.le.s32.totalorder 2, %s7
    // Predicated region
    $region29: #{activation_forward.1} parent=5 // pred_check
      %p123 = pneg %p122
    $region30: #{activation_forward.1} parent=5 // pred_check_branch
      %125 = sbr.rel (%p123) target = $region32
    $region31: #{activation_forward.1} parent=5 // pred_region
      %s126 = ssub.s32 %s7, 2
      // Predicated region
      $region33: #{activation_forward.1} parent=31 // pred_check
        %p127 = pneg %p62
      $region34: #{activation_forward.1} parent=31 // pred_check_branch
        %129 = sbr.rel (%p127) target = $region36
      $region35: #{activation_forward.1} parent=31 // pred_region
        %p130 = scmp.lt.s32.totalorder %s13, 1
        %s131 = scalar_select %p130, %s13, 1
        %s132 = smul.addr %s131, 8
        %s133 = scalar_lea.vmem %s1, %s132
      $region36: #{activation_forward.1} parent=31 // pred_fallthru
        _
    $region32: #{activation_forward.1} parent=5 // pred_fallthru
      _
  $region6: #{activation_forward.1} parent=0 // loop_footer
    %s11 = sadd.s32 1, %s7
  $region7: #{activation_forward.1} parent=0 // loop_footer_branch
    %6 = sbr.rel target = $region3
  $region8: #{activation_forward.1} parent=0 // loop_exit
    _

</llo_original>
